<compile_context>
chip_gen: v7x
topology: tpu7x:2x2x1
jax: 0.10.0
libtpu: 0.0.40
codegen_flags: <defaults>
</compile_context>

<pallas_src>
import functools

import jax
import jax.numpy as jnp
from jax import lax
from jax.experimental import pallas as pl
from jax.experimental.pallas import tpu as pltpu

NORM_EPSILON = 1e-8
BN_EPS = 1e-5


# ----------------------------- Pallas kernels --------------------------------
def _build_patches(x_ref, patch_ref, *, k, c_in, wp, q, stride):
    """Fused im2col: fill the (K, Q) VMEM patch matrix from lane-shifted slices
    of the flat padded image (C_in, Lf).  Q = Ho*Wp (padded-pitch columns)."""
    for ki in range(k):
        for kj in range(k):
            off = ki * wp + kj
            r0 = (ki * k + kj) * c_in
            if stride == 1:
                win = x_ref[:, off:off + q]                     # static lane window
            else:
                win = x_ref[:, pl.ds(off, q, stride=stride)]    # strided window
            patch_ref[r0:r0 + c_in, :] = win


def _conv_stats_kernel(w_ref, x_ref, stats_ref, patch_ref, *,
                       k, c_in, wp, wo, q, stride):
    # w_ref:     (C_out, K)  bf16  (grid-invariant)
    # x_ref:     (C_in, Lf)  bf16  (one padded image, flattened)
    # stats_ref: (C_out, 2)  f32   per-image [sum | sum_sq] partials
    # patch_ref: (K, Q)      bf16  VMEM scratch
    _build_patches(x_ref, patch_ref, k=k, c_in=c_in, wp=wp, q=q, stride=stride)
    acc = jnp.dot(w_ref[...], patch_ref[...],
                  preferred_element_type=jnp.float32)           # MXU, f32 accumulate
    # Columns with (q mod Wp) >= Wo are padded-pitch garbage: exclude from stats.
    col = lax.broadcasted_iota(jnp.int32, acc.shape, 1)
    acc = jnp.where((col % wp) < wo, acc, 0.0)
    ssum = jnp.sum(acc, axis=1, keepdims=True)                  # (C_out, 1)
    ssq = jnp.sum(acc * acc, axis=1, keepdims=True)             # (C_out, 1)
    # Single fused store of both statistics.  Kept (C_out, 2) (not (2, C_out)):
    # the lane-reduction result is sublane-oriented, so this avoids a
    # sublane->lane relayout that would cost more than the narrow store saves.
    stats_ref[...] = jnp.concatenate([ssum, ssq], axis=1)


def _conv_bn_relu_kernel(w_ref, st_ref, x_ref, y_ref, patch_ref, *,
                         k, c_in, wp, wo, ho, q, stride, with_relu):
    # Recomputes the conv (K is small, so this is cheaper than writing/reading
    # an f32 activation to HBM), applies the folded BN FMA + ReLU, and stores
    # directly in NCHW order.
    _build_patches(x_ref, patch_ref, k=k, c_in=c_in, wp=wp, q=q, stride=stride)
    acc = jnp.dot(w_ref[...], patch_ref[...],
                  preferred_element_type=jnp.float32)           # (C_out, Q) f32
    s = st_ref[:, 0:1]                                          # (C_out, 1) scale
    t = st_ref[:, 1:2]                                          # (C_out, 1) shift
    y = acc * s + t                                             # one FMA per element
    if with_relu:
        y = jnp.maximum(y, 0.0)
    y = y.astype(y_ref.dtype)
    # Compact padded-pitch rows (width Wp) to dense output rows (width Wo).
    # VMEM-only relayout; the HBM writeback of y_ref is already dense NCHW.
    # TODO(synk): for very large Ho switch this static unroll to a fori_loop.
    for r in range(ho):
        y_ref[:, r * wo:(r + 1) * wo] = y[:, r * wp:r * wp + wo]


# ------------------------------ JAX glue -------------------------------------
def _norm2(t):
    # torch norm2: sqrt(sum over axis 0 of t**2)
    return jnp.sqrt(jnp.sum(t * t, axis=0))


def _get_applied(param, param_mag, j):
    # is_variance only toggles detach() (gradient bookkeeping) -> no forward effect.
    normed = param[j] / (_norm2(param) + NORM_EPSILON)
    return normed * param_mag


def init_conv_block_params(key, m, c_in, out, k):
    """Deterministic re-creation of create_conv_params + create_batch_norm_params."""
    k1, k2 = jax.random.split(key)
    scaler = 1.0 / (c_in * k ** 2) ** 0.5
    weight = 2.0 * (jax.random.uniform(k1, (m, out, c_in, k, k), jnp.float32) - 0.5) * scaler
    bias = 2.0 * (jax.random.uniform(k2, (m, out), jnp.float32) - 0.5) * scaler
    bn_weight = jnp.ones((m, out), jnp.float32)
    bn_bias = jnp.zeros((m, out), jnp.float32)
    return dict(weight=weight, bias=bias,
                weight_mag=_norm2(weight), bias_mag=_norm2(bias),
                bn_weight=bn_weight, bn_bias=bn_bias,
                bn_weight_mag=_norm2(bn_weight), bn_bias_mag=_norm2(bn_bias))


def conv_block_forward(x, params, j, *, stride, padding, with_relu):
    """Forward pass of ConvBlock (training-mode BN). x: NCHW f32 -> NCHW f32."""
    # SharedMagnitude.get_params for the conv and the batch norm.
    w = _get_applied(params["weight"], params["weight_mag"], j)           # (C_out,C_in,k,k)
    # NOTE: the conv bias is intentionally NOT applied: a per-channel constant
    # added before training-mode batch-norm cancels exactly in (a - mean).
    gamma = _get_applied(params["bn_weight"], params["bn_weight_mag"], j)  # (C_out,)
    beta = _get_applied(params["bn_bias"], params["bn_bias_mag"], j)       # (C_out,)

    N, C_in, H, W = x.shape
    C_out, _, k, _ = w.shape
    Hp, Wp = H + 2 * padding, W + 2 * padding
    Ho = (Hp - k) // stride + 1
    Wo = (Wp - k) // stride + 1
    K = C_in * k * k
    Q = Ho * Wp                    # padded-pitch matmul columns per image
    P = N * Ho * Wo                # true per-channel element count for BN

    # Pad spatially (plus `stride` extra bottom rows so every lane-shifted
    # window in the kernel stays in bounds), cast to bf16, flatten H*W onto the
    # lane axis.  This is the ONLY host-side data-movement pass over the input
    # (~input-sized), vs. the k^2-inflated im2col of the previous version.
    xp = jnp.pad(x, ((0, 0), (0, 0),
                     (padding, padding + stride),
                     (padding, padding))).astype(jnp.bfloat16)
    Lf = (Hp + stride) * Wp
    x_flat = xp.reshape(N, C_in, Lf)

    # Weights as (C_out, K), K ordered (ki, kj, ci) to match the patch rows.
    w_bf = w.transpose(0, 2, 3, 1).reshape(C_out, K).astype(jnp.bfloat16)

    # Per-image blocks here are tiny; 32 MiB is safe on v5e/v6e/v7x.
    # TODO(synk): raise towards 64-96 MiB on v5e/v6e (128 MiB physical) and add
    # a spatial tile axis for very large images on v7x (64 MiB VMEM).
    vmem_limit = 32 * 1024 * 1024

    kern_consts = dict(k=k, c_in=C_in, wp=Wp, wo=Wo, q=Q, stride=stride)

    # ---- pass 1: fused im2col + conv matmul + per-image BN partials ----
    stats = pl.pallas_call(
        functools.partial(_conv_stats_kernel, **kern_consts),
        out_shape=jax.ShapeDtypeStruct((N, C_out, 2), jnp.float32),
        grid_spec=pltpu.PrefetchScalarGridSpec(
            num_scalar_prefetch=0,
            grid=(N,),
            in_specs=[
                # Weights are grid-invariant (tiny); Buffered(1) would shave the
                # duplicate buffer but the default is kept for lowering safety.
                pl.BlockSpec((C_out, K), lambda n: (0, 0)),
                pl.BlockSpec((None, C_in, Lf), lambda n: (n, 0, 0)),
            ],
            out_specs=pl.BlockSpec((None, C_out, 2), lambda n: (n, 0, 0)),
            scratch_shapes=[pltpu.VMEM((K, Q), jnp.bfloat16)],
        ),
        compiler_params=pltpu.CompilerParams(
            dimension_semantics=("parallel",),
            vmem_limit_bytes=vmem_limit),
        cost_estimate=pl.CostEstimate(
            flops=2 * N * C_out * K * Q, transcendentals=0,
            bytes_accessed=x_flat.size * 2 + w_bf.size * 2 + N * C_out * 2 * 4),
    )(w_bf, x_flat)

    # ---- finalize global BN stats (tiny, per-channel) & fold the affine ----
    total = jnp.sum(stats, axis=0)                    # (C_out, 2)
    mean = total[:, 0] / P
    # TODO(synk): one-pass E[x^2]-E[x]^2 variance (f32, clamped); switch to a
    # centered second pass if activations ever have |mean| >> std.
    var = jnp.maximum(total[:, 1] / P - mean * mean, 0.0)
    s = gamma * lax.rsqrt(var + BN_EPS)
    t = beta - mean * s
    st = jnp.stack([s, t], axis=1)                    # (C_out, 2) [scale | shift]

    # ---- pass 2: recompute conv + fused BN FMA + ReLU, NCHW output ----
    y_flat = pl.pallas_call(
        functools.partial(_conv_bn_relu_kernel, ho=Ho, with_relu=with_relu,
                          **kern_consts),
        out_shape=jax.ShapeDtypeStruct((N, C_out, Ho * Wo), jnp.float32),
        grid_spec=pltpu.PrefetchScalarGridSpec(
            num_scalar_prefetch=0,
            grid=(N,),
            in_specs=[
                pl.BlockSpec((C_out, K), lambda n: (0, 0)),
                pl.BlockSpec((C_out, 2), lambda n: (0, 0)),
                pl.BlockSpec((None, C_in, Lf), lambda n: (n, 0, 0)),
            ],
            out_specs=pl.BlockSpec((None, C_out, Ho * Wo), lambda n: (n, 0, 0)),
            scratch_shapes=[pltpu.VMEM((K, Q), jnp.bfloat16)],
        ),
        compiler_params=pltpu.CompilerParams(
            dimension_semantics=("parallel",),
            vmem_limit_bytes=vmem_limit),
        cost_estimate=pl.CostEstimate(
            flops=2 * N * C_out * Q * (K + 1), transcendentals=0,
            bytes_accessed=(x_flat.size * 2 + w_bf.size * 2 + st.size * 4
                            + N * C_out * Ho * Wo * 4)),
    )(w_bf, st, x_flat)

    # Contiguous reshape only (no transpose): the kernel already wrote NCHW.
    return y_flat.reshape(N, C_out, Ho, Wo)
    # TODO(synk): running_mean/running_var buffer updates (training-mode side
    # effect) and the eval-mode BN path (running stats + real conv-bias add)
    # are not materialized; they do not affect the training-mode forward output.


# ------------------------------ reference ------------------------------------
def _reference_forward(x, params, j, *, stride, padding, with_relu):
    w = _get_applied(params["weight"], params["weight_mag"], j)
    b = _get_applied(params["bias"], params["bias_mag"], j)
    gamma = _get_applied(params["bn_weight"], params["bn_weight_mag"], j)
    beta = _get_applied(params["bn_bias"], params["bn_bias_mag"], j)
    a = lax.conv_general_dilated(
        x, w, window_strides=(stride, stride),
        padding=[(padding, padding), (padding, padding)],
        dimension_numbers=("NCHW", "OIHW", "NCHW"),
        precision=lax.Precision.HIGHEST)
    a = a + b[None, :, None, None]          # bias kept here to show it cancels
    mean = jnp.mean(a, axis=(0, 2, 3), keepdims=True)
    var = jnp.mean(jnp.square(a - mean), axis=(0, 2, 3), keepdims=True)
    y = (a - mean) * lax.rsqrt(var + BN_EPS)
    y = y * gamma[None, :, None, None] + beta[None, :, None, None]
    if with_relu:
        y = jnp.maximum(y, 0.0)
    return y


# --------------------------------- main ---------------------------------------
if __name__ == "__main__":
    m, c_in, c_out, k = 3, 4, 8, 3
    stride, padding, with_relu = 1, 1, True
    N, H, W = 2, 16, 16
    j = 1

    key = jax.random.PRNGKey(0)
    kx, kp = jax.random.split(key)
    x = jax.random.normal(kx, (N, c_in, H, W), jnp.float32)
    params = init_conv_block_params(kp, m, c_in, c_out, k)

    y = conv_block_forward(x, params, j, stride=stride, padding=padding,
                           with_relu=with_relu)
    y = jax.block_until_ready(y)

    y_ref = _reference_forward(x, params, j, stride=stride, padding=padding,
                               with_relu=with_relu)
    assert y.shape == (N, c_out, H, W), y.shape
    max_err = float(jnp.max(jnp.abs(y - y_ref)))
    assert jnp.allclose(y, y_ref, rtol=5e-2, atol=5e-2), max_err

    print("KERNEL_OK")
</pallas_src>

<mosaic_0001>
module attributes {stable_mosaic.version = 11 : i64} {
  func.func @_conv_stats_kernel(%arg0: i32, %arg1: memref<8x36xbf16, #tpu.memory_space<vmem>>, %arg2: memref<1x4x342xbf16, #tpu.memory_space<vmem>>, %arg3: memref<1x8x2xf32, #tpu.memory_space<vmem>>, %arg4: memref<36x288xbf16, #tpu.memory_space<vmem>>) attributes {dimension_semantics = [#tpu.dimension_semantics<parallel>], iteration_bounds = array<i64: 2>, scalar_prefetch = 0 : i64, scratch_operands = 1 : i64, tpu.core_type = #tpu.core_type<tc>, window_params = [{pipeline_mode = #tpu.pipeline_mode<synchronous>, transform_indices = @transform_0, window_bounds = array<i64: 8, 36>}, {transform_indices = @transform_1, window_bounds = array<i64: 1, 4, 342>}, {transform_indices = @transform_2, window_bounds = array<i64: 1, 8, 2>}]} {
    %c0 = arith.constant 0 : index
    %c0_0 = arith.constant 0 : index
    %c0_1 = arith.constant 0 : index
    %0 = vector.load %arg2[%c0, %c0_0, %c0_1] : memref<1x4x342xbf16, #tpu.memory_space<vmem>>, vector<1x4x288xbf16>
    %1 = vector.shape_cast %0 : vector<1x4x288xbf16> to vector<4x288xbf16>
    %c0_2 = arith.constant 0 : index
    %c0_3 = arith.constant 0 : index
    %2 = vector.load %arg4[%c0_2, %c0_3] : memref<36x288xbf16, #tpu.memory_space<vmem>>, vector<4x288xbf16>
    tpu.vector_store %arg4[%c0_2, %c0_3], %1 {strides = array<i32>} : memref<36x288xbf16, #tpu.memory_space<vmem>>, vector<4x288xbf16>,
    %c0_4 = arith.constant 0 : index
    %c0_5 = arith.constant 0 : index
    %c1 = arith.constant 1 : index
    %3 = vector.load %arg2[%c0_4, %c0_5, %c1] : memref<1x4x342xbf16, #tpu.memory_space<vmem>>, vector<1x4x288xbf16>
    %4 = vector.shape_cast %3 : vector<1x4x288xbf16> to vector<4x288xbf16>
    %c4 = arith.constant 4 : index
    %c0_6 = arith.constant 0 : index
    %5 = vector.load %arg4[%c4, %c0_6] : memref<36x288xbf16, #tpu.memory_space<vmem>>, vector<4x288xbf16>
    tpu.vector_store %arg4[%c4, %c0_6], %4 {strides = array<i32>} : memref<36x288xbf16, #tpu.memory_space<vmem>>, vector<4x288xbf16>,
    %c0_7 = arith.constant 0 : index
    %c0_8 = arith.constant 0 : index
    %c2 = arith.constant 2 : index
    %6 = vector.load %arg2[%c0_7, %c0_8, %c2] : memref<1x4x342xbf16, #tpu.memory_space<vmem>>, vector<1x4x288xbf16>
    %7 = vector.shape_cast %6 : vector<1x4x288xbf16> to vector<4x288xbf16>
    %c8 = arith.constant 8 : index
    %c0_9 = arith.constant 0 : index
    %8 = vector.load %arg4[%c8, %c0_9] : memref<36x288xbf16, #tpu.memory_space<vmem>>, vector<4x288xbf16>
    tpu.vector_store %arg4[%c8, %c0_9], %7 {strides = array<i32>} : memref<36x288xbf16, #tpu.memory_space<vmem>>, vector<4x288xbf16>,
    %c0_10 = arith.constant 0 : index
    %c0_11 = arith.constant 0 : index
    %c18 = arith.constant 18 : index
    %9 = vector.load %arg2[%c0_10, %c0_11, %c18] : memref<1x4x342xbf16, #tpu.memory_space<vmem>>, vector<1x4x288xbf16>
    %10 = vector.shape_cast %9 : vector<1x4x288xbf16> to vector<4x288xbf16>
    %c12 = arith.constant 12 : index
    %c0_12 = arith.constant 0 : index
    %11 = vector.load %arg4[%c12, %c0_12] : memref<36x288xbf16, #tpu.memory_space<vmem>>, vector<4x288xbf16>
    tpu.vector_store %arg4[%c12, %c0_12], %10 {strides = array<i32>} : memref<36x288xbf16, #tpu.memory_space<vmem>>, vector<4x288xbf16>,
    %c0_13 = arith.constant 0 : index
    %c0_14 = arith.constant 0 : index
    %c19 = arith.constant 19 : index
    %12 = vector.load %arg2[%c0_13, %c0_14, %c19] : memref<1x4x342xbf16, #tpu.memory_space<vmem>>, vector<1x4x288xbf16>
    %13 = vector.shape_cast %12 : vector<1x4x288xbf16> to vector<4x288xbf16>
    %c16 = arith.constant 16 : index
    %c0_15 = arith.constant 0 : index
    %14 = vector.load %arg4[%c16, %c0_15] : memref<36x288xbf16, #tpu.memory_space<vmem>>, vector<4x288xbf16>
    tpu.vector_store %arg4[%c16, %c0_15], %13 {strides = array<i32>} : memref<36x288xbf16, #tpu.memory_space<vmem>>, vector<4x288xbf16>,
    %c0_16 = arith.constant 0 : index
    %c0_17 = arith.constant 0 : index
    %c20 = arith.constant 20 : index
    %15 = vector.load %arg2[%c0_16, %c0_17, %c20] : memref<1x4x342xbf16, #tpu.memory_space<vmem>>, vector<1x4x288xbf16>
    %16 = vector.shape_cast %15 : vector<1x4x288xbf16> to vector<4x288xbf16>
    %c20_18 = arith.constant 20 : index
    %c0_19 = arith.constant 0 : index
    %17 = vector.load %arg4[%c20_18, %c0_19] : memref<36x288xbf16, #tpu.memory_space<vmem>>, vector<4x288xbf16>
    tpu.vector_store %arg4[%c20_18, %c0_19], %16 {strides = array<i32>} : memref<36x288xbf16, #tpu.memory_space<vmem>>, vector<4x288xbf16>,
    %c0_20 = arith.constant 0 : index
    %c0_21 = arith.constant 0 : index
    %c36 = arith.constant 36 : index
    %18 = vector.load %arg2[%c0_20, %c0_21, %c36] : memref<1x4x342xbf16, #tpu.memory_space<vmem>>, vector<1x4x288xbf16>
    %19 = vector.shape_cast %18 : vector<1x4x288xbf16> to vector<4x288xbf16>
    %c24 = arith.constant 24 : index
    %c0_22 = arith.constant 0 : index
    %20 = vector.load %arg4[%c24, %c0_22] : memref<36x288xbf16, #tpu.memory_space<vmem>>, vector<4x288xbf16>
    tpu.vector_store %arg4[%c24, %c0_22], %19 {strides = array<i32>} : memref<36x288xbf16, #tpu.memory_space<vmem>>, vector<4x288xbf16>,
    %c0_23 = arith.constant 0 : index
    %c0_24 = arith.constant 0 : index
    %c37 = arith.constant 37 : index
    %21 = vector.load %arg2[%c0_23, %c0_24, %c37] : memref<1x4x342xbf16, #tpu.memory_space<vmem>>, vector<1x4x288xbf16>
    %22 = vector.shape_cast %21 : vector<1x4x288xbf16> to vector<4x288xbf16>
    %c28 = arith.constant 28 : index
    %c0_25 = arith.constant 0 : index
    %23 = vector.load %arg4[%c28, %c0_25] : memref<36x288xbf16, #tpu.memory_space<vmem>>, vector<4x288xbf16>
    tpu.vector_store %arg4[%c28, %c0_25], %22 {strides = array<i32>} : memref<36x288xbf16, #tpu.memory_space<vmem>>, vector<4x288xbf16>,
    %c0_26 = arith.constant 0 : index
    %c0_27 = arith.constant 0 : index
    %c38 = arith.constant 38 : index
    %24 = vector.load %arg2[%c0_26, %c0_27, %c38] : memref<1x4x342xbf16, #tpu.memory_space<vmem>>, vector<1x4x288xbf16>
    %25 = vector.shape_cast %24 : vector<1x4x288xbf16> to vector<4x288xbf16>
    %c32 = arith.constant 32 : index
    %c0_28 = arith.constant 0 : index
    %26 = vector.load %arg4[%c32, %c0_28] : memref<36x288xbf16, #tpu.memory_space<vmem>>, vector<4x288xbf16>
    tpu.vector_store %arg4[%c32, %c0_28], %25 {strides = array<i32>} : memref<36x288xbf16, #tpu.memory_space<vmem>>, vector<4x288xbf16>,
    %c0_29 = arith.constant 0 : index
    %c0_30 = arith.constant 0 : index
    %27 = vector.load %arg1[%c0_29, %c0_30] : memref<8x36xbf16, #tpu.memory_space<vmem>>, vector<8x36xbf16>
    %c0_31 = arith.constant 0 : index
    %c0_32 = arith.constant 0 : index
    %28 = vector.load %arg4[%c0_31, %c0_32] : memref<36x288xbf16, #tpu.memory_space<vmem>>, vector<36x288xbf16>
    %cst = arith.constant dense<0.000000e+00> : vector<8x288xf32>
    %29 = tpu.matmul %27, %28, %cst {dimension_numbers = #tpu.dot_dimension_numbers<[1], [0], [0], [1], [0, 0, 1, 1], [], []>} : vector<8x36xbf16>, vector<36x288xbf16>, vector<8x288xf32> -> vector<8x288xf32>
    %30 = tpu.iota {dimensions = array<i32: 1>} : vector<8x288xi32>
    %c18_i32 = arith.constant 18 : i32
    %c0_i32 = arith.constant 0 : i32
    %31 = arith.cmpi eq, %c18_i32, %c0_i32 : i32
    %c1_i32 = arith.constant 1 : i32
    %32 = arith.select %31, %c1_i32, %c18_i32 : i32
    %33 = vector.broadcast %32 : i32 to vector<8x288xi32>
    %34 = arith.remsi %30, %33 : vector<8x288xi32>
    %c0_i32_33 = arith.constant 0 : i32
    %35 = vector.broadcast %c0_i32_33 : i32 to vector<8x288xi32>
    %36 = arith.cmpi ne, %34, %35 : vector<8x288xi32>
    %c0_i32_34 = arith.constant 0 : i32
    %37 = vector.broadcast %c0_i32_34 : i32 to vector<8x288xi32>
    %38 = arith.cmpi slt, %34, %37 : vector<8x288xi32>
    %c0_i32_35 = arith.constant 0 : i32
    %39 = arith.cmpi slt, %32, %c0_i32_35 : i32
    %40 = vector.broadcast %39 : i1 to vector<8x288xi1>
    %41 = vector.broadcast %40 : vector<8x288xi1> to vector<8x288xi1>
    %42 = arith.xori %38, %41 : vector<8x288xi1>
    %43 = arith.andi %42, %36 : vector<8x288xi1>
    %44 = vector.broadcast %32 : i32 to vector<8x288xi32>
    %45 = arith.addi %34, %44 : vector<8x288xi32>
    %46 = arith.select %43, %45, %34 : vector<8x288xi1>, vector<8x288xi32>
    %c16_i32 = arith.constant 16 : i32
    %47 = vector.broadcast %c16_i32 : i32 to vector<8x288xi32>
    %48 = arith.cmpi slt, %46, %47 : vector<8x288xi32>
    %cst_36 = arith.constant 0.000000e+00 : f32
    %49 = vector.broadcast %cst_36 : f32 to vector<8x288xf32>
    %50 = arith.select %48, %29, %49 : vector<8x288xi1>, vector<8x288xf32>
    %cst_37 = arith.constant dense<0.000000e+00> : vector<8xf32>
    %51 = vector.multi_reduction <add>, %50, %cst_37 [1] : vector<8x288xf32> to vector<8xf32>
    %52 = vector.shape_cast %51 : vector<8xf32> to vector<8x1xf32>
    %53 = arith.mulf %50, %50 : vector<8x288xf32>
    %cst_38 = arith.constant dense<0.000000e+00> : vector<8xf32>
    %54 = vector.multi_reduction <add>, %53, %cst_38 [1] : vector<8x288xf32> to vector<8xf32>
    %55 = vector.shape_cast %54 : vector<8xf32> to vector<8x1xf32>
    %56 = tpu.concatenate %52, %55 in 1 : vector<8x1xf32>, vector<8x1xf32> -> vector<8x2xf32>
    %c0_39 = arith.constant 0 : index
    %c0_40 = arith.constant 0 : index
    %c0_41 = arith.constant 0 : index
    %57 = vector.load %arg3[%c0_39, %c0_40, %c0_41] : memref<1x8x2xf32, #tpu.memory_space<vmem>>, vector<1x8x2xf32>
    %58 = vector.shape_cast %57 : vector<1x8x2xf32> to vector<8x2xf32>
    %59 = vector.shape_cast %56 : vector<8x2xf32> to vector<1x8x2xf32>
    tpu.vector_store %arg3[%c0_39, %c0_40, %c0_41], %59 {strides = array<i32>} : memref<1x8x2xf32, #tpu.memory_space<vmem>>, vector<1x8x2xf32>,
    return
  }
  func.func @transform_0(%arg0: i32) -> (i32, i32) {
    %c0_i32 = arith.constant 0 : i32
    %c0_i32_0 = arith.constant 0 : i32
    %c0_i32_1 = arith.constant 0 : i32
    return %c0_i32, %c0_i32_0 : i32, i32
  }
  func.func @transform_1(%arg0: i32) -> (i32, i32, i32) {
    %c0_i32 = arith.constant 0 : i32
    %c0_i32_0 = arith.constant 0 : i32
    %c0_i32_1 = arith.constant 0 : i32
    return %arg0, %c0_i32, %c0_i32_0 : i32, i32, i32
  }
  func.func @transform_2(%arg0: i32) -> (i32, i32, i32) {
    %c0_i32 = arith.constant 0 : i32
    %c0_i32_0 = arith.constant 0 : i32
    %c0_i32_1 = arith.constant 0 : i32
    return %arg0, %c0_i32, %c0_i32_0 : i32, i32, i32
  }
}

</mosaic_0001>

<llo_original>
// kernel: tpu_custom_call.1
$region0: #{tpu_custom_call.1}
  #allocation0 [shape = 'u32[]', space=smem, size = 0x4, offset = 0x4, fixed_abs, tag = 'smem constant byte address 0x4 - core index']
  #allocation1 [shape = 'u32[144,128]{1,0:T(1,128)}', space=vmem, size = 0x12000, scoped, tag = 'internal scratch']
  #allocation2 [shape = 'bf16[36,288]{1,0:T(8,128)(2,1)}', space=vmem, size = 0x7800, scoped, tag = 'scratch operand']
  %s0 = inlined_call_operand.hbm [shape: bf16[8,36], index: 0, kind: input, shape index: {}]
  %s1 = inlined_call_operand.hbm [shape: bf16[2,4,342], index: 1, kind: input, shape index: {}]
  %s2 = inlined_call_operand.vmem [shape: f32[2,8,2], index: 2, kind: output, shape index: {}]
  %s3 = sld [smem:[#allocation0]]
  $region49: #{tpu_custom_call.1} parent=0
    _
  %s5 = ssub.s32 1, %s3
  %s6 = scalar_select 0, %s5, %s3
  $region1: #{tpu_custom_call.1} parent=0
    #allocation3 [shape = 'u8[2048]{0}', space=vmem, size = 0x800, scoped, tag = 'input window, operand 0, single buffered']
    #allocation4 [shape = 's32[2]{0}', space=sflag, size = 0x8, scoped, tag = 'scoped memory for tpu_custom_call.1']
    #allocation5 [shape = 'u8[6144]{0}', space=vmem, size = 0x1800, scoped, tag = 'input window, operand 1']
    #allocation6 [shape = 's32[2]{0}', space=sflag, size = 0x8, scoped, tag = 'scoped memory for tpu_custom_call.1']
    %7 = vsyncpa [#allocation4], 0
    %8 = vsyncpa [#allocation6], 0
    %s9 = scalar_lea.sflag [#allocation6], 1
    %10 = vsyncpa %s9, 0
    loop: start=0, step=1, limit=4
    $region2: #{tpu_custom_call.1} parent=1 // loop_pre_header
      _
    $region3: #{tpu_custom_call.1} parent=1 // loop_header
      %s12 = sphi 0, %s16
      %p13 = scmp.ge.s32.totalorder %s12, 4
      %s20 = sphi 0, %s20
      %s22 = sphi 0, %s20
      %s23 = sphi 0, %s22
      %s37 = sphi 0, %s23
      %s43 = sphi 0, %s45
      %s46 = sphi 0, %s43
      %s47 = sphi 0, %s46
      %s63 = sphi 0, %s47
      %s69 = sphi 0, %s71
      %s72 = sphi 0, %s69
      %s73 = sphi 0, %s72
      %s89 = sphi 0, %s73
    $region4: #{tpu_custom_call.1} parent=1 // loop_header_branch
      %15 = sbr.rel (%p13) target = $region8
    $region5: #{tpu_custom_call.1} parent=1 // loop_body
      %s17 = ssub.s32 %s12, 1
      %s18 = ssub.s32 %s12, 2
      %s19 = sadd.s32 %s12, 1
      %s21 = sadd.s32 %s20, 1
      %p24 = scmp.eq.s32.totalorder %s12, 1
      %p25 = scmp.ne.s32.totalorder %s20, %s22
      %p26 = scmp.eq.s32.totalorder %s12, 0
      %p27 = por %p25, %p26
      %p28 = scmp.ne.s32.totalorder %s20, %s22
      %p29 = scmp.eq.s32.totalorder %s17, 1
      %p30 = por %p28, %p29
      %p31 = scmp.ne.s32.totalorder %s22, %s23
      %p32 = scmp.eq.s32.totalorder %s17, 0
      %p33 = por %p31, %p32
      %p34 = scmp.ne.s32.totalorder %s22, %s23
      %p35 = scmp.eq.s32.totalorder %s18, 1
      %p36 = por %p34, %p35
      %p38 = scmp.ne.s32.totalorder %s23, %s37
      %p39 = scmp.eq.s32.totalorder %s18, 0
      %p40 = por %p38, %p39
      %s41 = ssub.s32 %s12, %s19
      %p42 = scmp.eq.s32.totalorder %s41, 0
      %s44 = sadd.s32 %s43, 1
      %s45 = scalar_select %p42, %s43, %s44
      %p48 = pneg %p42
      %p49 = scmp.eq.s32.totalorder %s12, 1
      %p50 = por %p48, %p49
      %p51 = scmp.ne.s32.totalorder %s43, %s46
      %p52 = scmp.eq.s32.totalorder %s12, 0
      %p53 = por %p51, %p52
      %p54 = scmp.ne.s32.totalorder %s43, %s46
      %p55 = scmp.eq.s32.totalorder %s17, 1
      %p56 = por %p54, %p55
      %p57 = scmp.ne.s32.totalorder %s46, %s47
      %p58 = scmp.eq.s32.totalorder %s17, 0
      %p59 = por %p57, %p58
      %p60 = scmp.ne.s32.totalorder %s46, %s47
      %p61 = scmp.eq.s32.totalorder %s18, 1
      %p62 = por %p60, %p61
      %p64 = scmp.ne.s32.totalorder %s47, %s63
      %p65 = scmp.eq.s32.totalorder %s18, 0
      %p66 = por %p64, %p65
      %s67 = ssub.s32 %s12, %s19
      %p68 = scmp.eq.s32.totalorder %s67, 0
      %s70 = sadd.s32 %s69, 1
      %s71 = scalar_select %p68, %s69, %s70
      %p74 = pneg %p68
      %p75 = scmp.eq.s32.totalorder %s12, 1
      %p76 = por %p74, %p75
      %p77 = scmp.ne.s32.totalorder %s69, %s72
      %p78 = scmp.eq.s32.totalorder %s12, 0
      %p79 = por %p77, %p78
      %p80 = scmp.ne.s32.totalorder %s69, %s72
      %p81 = scmp.eq.s32.totalorder %s17, 1
      %p82 = por %p80, %p81
      %p83 = scmp.ne.s32.totalorder %s72, %s73
      %p84 = scmp.eq.s32.totalorder %s17, 0
      %p85 = por %p83, %p84
      %p86 = scmp.ne.s32.totalorder %s72, %s73
      %p87 = scmp.eq.s32.totalorder %s18, 1
      %p88 = por %p86, %p87
      %p90 = scmp.ne.s32.totalorder %s73, %s89
      %p91 = scmp.eq.s32.totalorder %s18, 0
      %p92 = por %p90, %p91
      %p93 = scmp.le.s32.totalorder 1, %s12
      %p94 = scmp.lt.s32.totalorder %s12, 3
      %p95 = pnand %p93, %p94
      %p96 = pneg %p95
      // Predicated region
      $region9: #{tpu_custom_call.1} parent=5 // pred_check
        _
      $region10: #{tpu_custom_call.1} parent=5 // pred_check_branch
        %98 = sbr.rel (%p95) target = $region12
      $region11: #{tpu_custom_call.1} parent=5 // pred_region
        %s99 = ssub.s32 %s12, 1
        // Predicated region
        $region13: #{tpu_custom_call.1} parent=11 // pred_check
          %p100 = pneg %p33
        $region14: #{tpu_custom_call.1} parent=11 // pred_check_branch
          %102 = sbr.rel (%p100) target = $region16
        $region15: #{tpu_custom_call.1} parent=11 // pred_region
          %s104 = ssub.s32 64, 64
          %105 = vsyncadd [#allocation4], %s104
          %s107 = sshll.u32 [#allocation3], 4
          %s108 = int_to_ptr.vmem [resolvable:$true] %s107
          %110 = dma.hbm_to_vmem [thread:$0]  %s0, 64, %s108, [#allocation4]
        $region16: #{tpu_custom_call.1} parent=11 // pred_fallthru
          _
      $region12: #{tpu_custom_call.1} parent=5 // pred_fallthru
        _
      %p111 = scmp.lt.s32.totalorder %s12, 2
      // Predicated region
      $region17: #{tpu_custom_call.1} parent=5 // pred_check
        %p112 = pneg %p111
      $region18: #{tpu_custom_call.1} parent=5 // pred_check_branch
        %114 = sbr.rel (%p112) target = $region20
      $region19: #{tpu_custom_call.1} parent=5 // pred_region
        // Predicated region
        $region21: #{tpu_custom_call.1} parent=19 // pred_check
          %p115 = pneg %p53
        $region22: #{tpu_custom_call.1} parent=19 // pred_check_branch
          %117 = sbr.rel (%p115) target = $region24
        $region23: #{tpu_custom_call.1} parent=19 // pred_region
          %s118 = sand.u32 %s43, 1
          %s119 = scalar_lea.sflag [#allocation6], %s118
          %s120 = sand.u32 %s43, 1
          %s121 = smul.addr %s120, 6
          %s122 = scalar_lea.vmem [#allocation5], %s121
          %s124 = ssub.s32 96, 96
          %125 = vsyncadd %s119, %s124
          %s126 = smul.addr %s12, 3
          %s127 = smul.addr %s126, 32
          %s128 = scalar_lea.hbm %s1, %s127
          %s130 = sshll.u32 %s122, 4
          %s131 = int_to_ptr.vmem [resolvable:$true] %s130
          %133 = dma.hbm_to_vmem [thread:$0]  %s128, 96, %s131, %s119
        $region24: #{tpu_custom_call.1} parent=19 // pred_fallthru
          _
      $region20: #{tpu_custom_call.1} parent=5 // pred_fallthru
        _
      %p134 = scmp.le.s32.totalorder 1, %s12
      %p135 = scmp.lt.s32.totalorder %s12, 3
      %p136 = pnand %p134, %p135
      %p137 = pneg %p136
      // Predicated region
      $region25: #{tpu_custom_call.1} parent=5 // pred_check
        _
      $region26: #{tpu_custom_call.1} parent=5 // pred_check_branch
        %139 = sbr.rel (%p136) target = $region28
      $region27: #{tpu_custom_call.1} parent=5 // pred_region
        %s140 = ssub.s32 %s12, 1
        // Predicated region
        $region29: #{tpu_custom_call.1} parent=27 // pred_check
          %p141 = pneg %p33
        $region30: #{tpu_custom_call.1} parent=27 // pred_check_branch
          %143 = sbr.rel (%p141) target = $region32
        $region31: #{tpu_custom_call.1} parent=27 // pred_region
          %144 = dma.done [#allocation4], 64
        $region32: #{tpu_custom_call.1} parent=27 // pred_fallthru
          _
        %s145 = sand.u32 %s46, 1
        %s146 = scalar_lea.sflag [#allocation6], %s145
        %s147 = sand.u32 %s46, 1
        %s148 = smul.addr %s147, 6
        %s149 = scalar_lea.vmem [#allocation5], %s148
        // Predicated region
        $region33: #{tpu_custom_call.1} parent=27 // pred_check
          %p150 = pneg %p59
        $region34: #{tpu_custom_call.1} parent=27 // pred_check_branch
          %152 = sbr.rel (%p150) target = $region36
        $region35: #{tpu_custom_call.1} parent=27 // pred_region
          %153 = dma.done %s146, 96
        $region36: #{tpu_custom_call.1} parent=27 // pred_fallthru
          _
        %p154 = pneg %p33
        %p155 = pneg %p30
        %s156 = sand.u32 %s46, 1
        %s157 = scalar_lea.sflag [#allocation6], %s156
        %s158 = sand.u32 %s46, 1
        %s159 = smul.addr %s158, 6
        %s160 = scalar_lea.vmem [#allocation5], %s159
        %p161 = pneg %p59
        %p162 = pneg %p56
        %p163 = pneg %p85
        %p164 = pneg %p82
        %p165 = scmp.lt.s32.totalorder %s17, 1
        %s166 = scalar_select %p165, %s17, 1
        %s167 = smul.addr %s166, 8
        %s168 = scalar_lea.vmem %s2, %s167
        %p169 = scmp.lt.s32.totalorder %s17, 1
        %s170 = scalar_select %p169, %s17, 1
        %s171 = smul.addr %s170, 8
        %s172 = scalar_lea.vmem %s2, %s171
        %v174 = vld [vmem:[%s149] sm:$0x3f]
        %v176 = vcombine.high %v174, %v174
        %v178 = vunpack.c.l.s4 1983009808
        %v179 = vunpack.c.0.s8 %v178
        %v180 = vlaneseq
        %v181 = vshrl.u32 %v180, 7
        %v182 = vsub.s32 %v179, %v181
        %v183 = vrot.slane %v174, %v182
        %v185 = vunpack.c.l.s4 1983009808
        %v186 = vunpack.c.0.s8 %v185
        %v187 = vlaneseq
        %v188 = vshrl.u32 %v187, 7
        %v189 = vsub.s32 %v186, %v188
        %v190 = vrot.slane %v176, %v189
        %193 = vst [vmem:[#allocation2] sm:$0x33] %v183
        %vm194 = vcmask 254976
        %195 = vst.msk [vmem:[#allocation2 + $0x8] sm:$0x3] %vm194, %v190
        %v196 = vld [vmem:[%s149] sm:$0x3f]
        %v198 = vcombine.low %v196, %v196
        %v200 = vunpack.c.l.s4 1983009808
        %v201 = vunpack.c.0.s8 %v200
        %v202 = vlaneseq
        %v203 = vshrl.u32 %v202, 7
        %v204 = vsub.s32 %v201, %v203
        %v205 = vrot.slane %v198, %v204
        %v207 = vunpack.c.l.s4 1983009808
        %v208 = vunpack.c.0.s8 %v207
        %v209 = vlaneseq
        %v210 = vshrl.u32 %v209, 7
        %v211 = vsub.s32 %v208, %v210
        %v212 = vrot.slane %v196, %v211
        %213 = vrot.lane.b32.xlu0 %v205, 127
        %v214 = vpop.permute.xlu0 %213
        %215 = vrot.lane.b32.xlu0 %v212, 127
        %v216 = vpop.permute.xlu0 %215
        %v217 = vrot.slane %v214, 4
        %v218 = vrot.slane %v216, 4
        %vm219 = vcmask 1043456
        %v220 = vsel %vm219, %v217, %v218
        %vm221 = vcmask 1039360
        %v222 = vsel %vm221, %v214, %v220
        %225 = vst [vmem:[#allocation2] sm:$0xcc] %v222
        %vm226 = vcmask 257026
        %227 = vst.msk [vmem:[#allocation2 + $0x8] sm:$0xc] %vm226, %v216
        %v228 = vld [vmem:[%s149] sm:$0x3f]
        %v230 = vcombine.high %v228, %v228
        %v232 = vunpack.c.l.s4 1983009808
        %v233 = vunpack.c.0.s8 %v232
        %v234 = vlaneseq
        %v235 = vshrl.u32 %v234, 7
        %v236 = vsub.s32 %v233, %v235
        %v237 = vrot.slane %v228, %v236
        %v239 = vunpack.c.l.s4 1983009808
        %v240 = vunpack.c.0.s8 %v239
        %v241 = vlaneseq
        %v242 = vshrl.u32 %v241, 7
        %v243 = vsub.s32 %v240, %v242
        %v244 = vrot.slane %v230, %v243
        %245 = vrot.lane.b32.xlu0 %v237, 126
        %v246 = vpop.permute.xlu0 %245
        %247 = vrot.lane.b32.xlu0 %v244, 126
        %v248 = vpop.permute.xlu0 %247
        %v249 = vrot.slane %v246, 4
        %v250 = vrot.slane %v248, 4
        %v251 = vsel %vm219, %v249, %v250
        %vm252 = vcmask 1031168
        %v253 = vsel %vm252, %v246, %v251
        %256 = vst [vmem:[#allocation2 + $0xc] sm:$0x33] %v253
        %257 = vst.msk [vmem:[#allocation2 + $0x14] sm:$0x3] %vm194, %v248
        %v258 = vld [vmem:[%s149] sm:$0x3f]
        %v260 = vcombine.low %v258, %v258
        %v262 = vunpack.c.l.s4 1983009808
        %v263 = vunpack.c.0.s8 %v262
        %v264 = vlaneseq
        %v265 = vshrl.u32 %v264, 7
        %v266 = vsub.s32 %v263, %v265
        %v267 = vrot.slane %v260, %v266
        %v269 = vunpack.c.l.s4 1983009808
        %v270 = vunpack.c.0.s8 %v269
        %v271 = vlaneseq
        %v272 = vshrl.u32 %v271, 7
        %v273 = vsub.s32 %v270, %v272
        %v274 = vrot.slane %v258, %v273
        %275 = vrot.lane.b32.xlu0 %v267, 110
        %v276 = vpop.permute.xlu0 %275
        %277 = vrot.lane.b32.xlu0 %v274, 110
        %v278 = vpop.permute.xlu0 %277
        %v279 = vrot.slane %v276, 4
        %v280 = vrot.slane %v278, 4
        %v281 = vsel %vm219, %v279, %v280
        %vm282 = vcmask 900096
        %v283 = vsel %vm282, %v276, %v281
        %286 = vst [vmem:[#allocation2 + $0xc] sm:$0xcc] %v283
        %287 = vst.msk [vmem:[#allocation2 + $0x14] sm:$0xc] %vm226, %v278
        %v288 = vld [vmem:[%s149] sm:$0x3f]
        %v290 = vcombine.high %v288, %v288
        %v292 = vunpack.c.l.s4 1983009808
        %v293 = vunpack.c.0.s8 %v292
        %v294 = vlaneseq
        %v295 = vshrl.u32 %v294, 7
        %v296 = vsub.s32 %v293, %v295
        %v297 = vrot.slane %v288, %v296
        %v299 = vunpack.c.l.s4 1983009808
        %v300 = vunpack.c.0.s8 %v299
        %v301 = vlaneseq
        %v302 = vshrl.u32 %v301, 7
        %v303 = vsub.s32 %v300, %v302
        %v304 = vrot.slane %v290, %v303
        %305 = vrot.lane.b32.xlu0 %v297, 109
        %v306 = vpop.permute.xlu0 %305
        %307 = vrot.lane.b32.xlu0 %v304, 109
        %v308 = vpop.permute.xlu0 %307
        %v309 = vrot.slane %v306, 4
        %v310 = vrot.slane %v308, 4
        %v311 = vsel %vm219, %v309, %v310
        %vm312 = vcmask 891904
        %v313 = vsel %vm312, %v306, %v311
        %316 = vst [vmem:[#allocation2 + $0x18] sm:$0x33] %v313
        %317 = vst.msk [vmem:[#allocation2 + $0x20] sm:$0x3] %vm194, %v308
        %v318 = vld [vmem:[%s149] sm:$0x3f]
        %v320 = vcombine.low %v318, %v318
        %v322 = vunpack.c.l.s4 1983009808
        %v323 = vunpack.c.0.s8 %v322
        %v324 = vlaneseq
        %v325 = vshrl.u32 %v324, 7
        %v326 = vsub.s32 %v323, %v325
        %v327 = vrot.slane %v320, %v326
        %v329 = vunpack.c.l.s4 1983009808
        %v330 = vunpack.c.0.s8 %v329
        %v331 = vlaneseq
        %v332 = vshrl.u32 %v331, 7
        %v333 = vsub.s32 %v330, %v332
        %v334 = vrot.slane %v318, %v333
        %335 = vrot.lane.b32.xlu0 %v327, 108
        %v336 = vpop.permute.xlu0 %335
        %337 = vrot.lane.b32.xlu0 %v334, 108
        %v338 = vpop.permute.xlu0 %337
        %v339 = vrot.slane %v336, 4
        %v340 = vrot.slane %v338, 4
        %v341 = vsel %vm219, %v339, %v340
        %vm342 = vcmask 883712
        %v343 = vsel %vm342, %v336, %v341
        %346 = vst [vmem:[#allocation2 + $0x18] sm:$0xcc] %v343
        %347 = vst.msk [vmem:[#allocation2 + $0x20] sm:$0xc] %vm226, %v338
        %v348 = vld [vmem:[%s149] sm:$0x3f]
        %v350 = vcombine.high %v348, %v348
        %v352 = vunpack.c.l.s4 1983009808
        %v353 = vunpack.c.0.s8 %v352
        %v354 = vlaneseq
        %v355 = vshrl.u32 %v354, 7
        %v356 = vsub.s32 %v353, %v355
        %v357 = vrot.slane %v348, %v356
        %v359 = vunpack.c.l.s4 1983009808
        %v360 = vunpack.c.0.s8 %v359
        %v361 = vlaneseq
        %v362 = vshrl.u32 %v361, 7
        %v363 = vsub.s32 %v360, %v362
        %v364 = vrot.slane %v350, %v363
        %365 = vrot.lane.b32.xlu0 %v357, 92
        %v366 = vpop.permute.xlu0 %365
        %367 = vrot.lane.b32.xlu0 %v364, 92
        %v368 = vpop.permute.xlu0 %367
        %v369 = vrot.slane %v366, 4
        %v370 = vrot.slane %v368, 4
        %v371 = vsel %vm219, %v369, %v370
        %vm372 = vcmask 752640
        %v373 = vsel %vm372, %v366, %v371
        %376 = vst [vmem:[#allocation2 + $0x24] sm:$0x33] %v373
        %377 = vst.msk [vmem:[#allocation2 + $0x2c] sm:$0x3] %vm194, %v368
        %v378 = vld [vmem:[%s149] sm:$0x3f]
        %v380 = vcombine.low %v378, %v378
        %v382 = vunpack.c.l.s4 1983009808
        %v383 = vunpack.c.0.s8 %v382
        %v384 = vlaneseq
        %v385 = vshrl.u32 %v384, 7
        %v386 = vsub.s32 %v383, %v385
        %v387 = vrot.slane %v380, %v386
        %v389 = vunpack.c.l.s4 1983009808
        %v390 = vunpack.c.0.s8 %v389
        %v391 = vlaneseq
        %v392 = vshrl.u32 %v391, 7
        %v393 = vsub.s32 %v390, %v392
        %v394 = vrot.slane %v378, %v393
        %395 = vrot.lane.b32.xlu0 %v387, 91
        %v396 = vpop.permute.xlu0 %395
        %397 = vrot.lane.b32.xlu0 %v394, 91
        %v398 = vpop.permute.xlu0 %397
        %v399 = vrot.slane %v396, 4
        %v400 = vrot.slane %v398, 4
        %v401 = vsel %vm219, %v399, %v400
        %vm402 = vcmask 744448
        %v403 = vsel %vm402, %v396, %v401
        %406 = vst [vmem:[#allocation2 + $0x24] sm:$0xcc] %v403
        %407 = vst.msk [vmem:[#allocation2 + $0x2c] sm:$0xc] %vm226, %v398
        %v408 = vld [vmem:[%s149] sm:$0x3f]
        %v410 = vcombine.high %v408, %v408
        %v412 = vunpack.c.l.s4 1983009808
        %v413 = vunpack.c.0.s8 %v412
        %v414 = vlaneseq
        %v415 = vshrl.u32 %v414, 7
        %v416 = vsub.s32 %v413, %v415
        %v417 = vrot.slane %v408, %v416
        %v419 = vunpack.c.l.s4 1983009808
        %v420 = vunpack.c.0.s8 %v419
        %v421 = vlaneseq
        %v422 = vshrl.u32 %v421, 7
        %v423 = vsub.s32 %v420, %v422
        %v424 = vrot.slane %v410, %v423
        %425 = vrot.lane.b32.xlu0 %v417, 90
        %v426 = vpop.permute.xlu0 %425
        %427 = vrot.lane.b32.xlu0 %v424, 90
        %v428 = vpop.permute.xlu0 %427
        %v429 = vrot.slane %v426, 4
        %v430 = vrot.slane %v428, 4
        %v431 = vsel %vm219, %v429, %v430
        %vm432 = vcmask 736256
        %v433 = vsel %vm432, %v426, %v431
        %436 = vst [vmem:[#allocation2 + $0x30] sm:$0x33] %v433
        %437 = vst.msk [vmem:[#allocation2 + $0x38] sm:$0x3] %vm194, %v428
        %v438 = vld [vmem:[#allocation3] sm:$0xf]
        %v439 = vld [vmem:[#allocation2] sm:$0xff]
        %v440 = vld [vmem:[#allocation2 + $0x8] sm:$0xf]
        %v441 = vld [vmem:[#allocation2 + $0xc] sm:$0xff]
        %v442 = vld [vmem:[#allocation2 + $0x14] sm:$0xf]
        %v443 = vld [vmem:[#allocation2 + $0x18] sm:$0xff]
        %v444 = vld [vmem:[#allocation2 + $0x20] sm:$0xf]
        %v445 = vld [vmem:[#allocation2 + $0x24] sm:$0xff]
        %v446 = vld [vmem:[#allocation2 + $0x2c] sm:$0xf]
        %v447 = vld [vmem:[#allocation2 + $0x30] sm:$0x33]
        %v448 = vld [vmem:[#allocation2 + $0x38] sm:$0x3]
        %v459 = vunpack.c.l.b16 %v439
        %v460 = vunpack.c.h.b16 %v439
        %v461 = vunpack.c.l.b16 %v440
        %v462 = vunpack.c.l.b16 %v441
        %v463 = vunpack.c.h.b16 %v441
        %v464 = vunpack.c.l.b16 %v442
        %v465 = vunpack.c.l.b16 %v443
        %v466 = vunpack.c.h.b16 %v443
        %v467 = vunpack.c.l.b16 %v444
        %v468 = vunpack.c.l.b16 %v445
        %v469 = vunpack.c.h.b16 %v445
        %v470 = vunpack.c.l.b16 %v446
        %v471 = vunpack.c.l.b16 %v447
        %v472 = vunpack.c.h.b16 %v447
        %v473 = vunpack.c.l.b16 %v448
        %v474 = vpack.c.b16 %v462, %v459
        %v475 = vpack.c.b16 %v463, %v460
        %v476 = vpack.c.b16 %v464, %v461
        %v477 = vpack.c.b16 %v468, %v465
        %v478 = vpack.c.b16 %v469, %v466
        %v479 = vpack.c.b16 %v470, %v467
        %v480 = vpack.c.b16 %v471, %v471
        %v481 = vpack.c.b16 %v472, %v472
        %v482 = vpack.c.b16 %v473, %v473
        %vm489 = vcmask 293888
        %v491 = vsel %vm489, %v438, 0
        %vm493 = vcmask 1041408
        %v495 = vsel %vm493, %v480, 0
        %v498 = vsel %vm493, %v481, 0
        %v501 = vsel %vm493, %v482, 0
        %503 = vmatprep.subr.bf16.mxu0 %v475
        %504 = vmatpush1.bf16.msra.mxu0 %v474
        %505 = vmatprep.subr.bf16.mxu0 %v478
        %506 = vmatpush1.bf16.msra.mxu0 %v477
        %507 = vmatprep.subr.bf16.mxu0 %v498
        %508 = vmatpush1.bf16.msra.mxu0 %v495
        %509 = vmatprep.subr.bf16.mxu0 0
        %510 = vmatpush1.bf16.msra.mxu0 0
        %511 = vmatprep.subr.bf16.mxu0 0
        %512 = vmatpush1.bf16.msra.mxu0 0
        %513 = vmatprep.subr.bf16.mxu0 0
        %514 = vmatpush1.bf16.msra.mxu0 0
        %515 = vmatprep.subr.bf16.mxu0 0
        %516 = vmatpush1.bf16.msra.mxu0 0
        %517 = vmatprep.subr.bf16.mxu0 0
        %518 = vmatpush1.bf16.msra.mxu0 0
        %519 = vmatprep.subr.bf16.mxu0 0
        %520 = vmatpush1.bf16.msra.mxu0 0
        %521 = vmatprep.subr.bf16.mxu0 0
        %522 = vmatpush1.bf16.msra.mxu0 0
        %523 = vmatprep.subr.bf16.mxu0 0
        %524 = vmatpush1.bf16.msra.mxu0 0
        %525 = vmatprep.subr.bf16.mxu0 0
        %526 = vmatpush1.bf16.msra.mxu0 0
        %527 = vmatprep.subr.bf16.mxu0 0
        %528 = vmatpush1.bf16.msra.mxu0 0
        %529 = vmatprep.subr.bf16.mxu0 0
        %530 = vmatpush1.bf16.msra.mxu0 0
        %531 = vmatprep.subr.bf16.mxu0 0
        %532 = vmatpush1.bf16.msra.mxu0 0
        %533 = vmatprep.subr.bf16.mxu0 0
        %534 = vmatpush1.bf16.msra.mxu0 0
        %535 = vmatprep.mubr.bf16.mxu0 0
        %536 = vmatmul.mubr.bf16.gmra.mrb[0].mxu0 %v491
        %v537 = vpop.f32.mrb[0].mxu0
        %v538 = vadd.f32 0.0, %v537
        %v539 = vpop.f32.mrb[0].mxu0
        %v540 = vadd.f32 0.0, %v539
        %v541 = vpop.f32.mrb[0].mxu0
        %v542 = vpop.f32.mrb[0].mxu0
        %543 = vdwg.mxu0
        %544 = vmatprep.subr.bf16.mxu0 0
        %545 = vmatpush1.bf16.msra.mxu0 %v476
        %546 = vmatprep.subr.bf16.mxu0 0
        %547 = vmatpush1.bf16.msra.mxu0 %v479
        %548 = vmatprep.subr.bf16.mxu0 0
        %549 = vmatpush1.bf16.msra.mxu0 %v501
        %550 = vmatprep.subr.bf16.mxu0 0
        %551 = vmatpush1.bf16.msra.mxu0 0
        %552 = vmatprep.subr.bf16.mxu0 0
        %553 = vmatpush1.bf16.msra.mxu0 0
        %554 = vmatprep.subr.bf16.mxu0 0
        %555 = vmatpush1.bf16.msra.mxu0 0
        %556 = vmatprep.subr.bf16.mxu0 0
        %557 = vmatpush1.bf16.msra.mxu0 0
        %558 = vmatprep.subr.bf16.mxu0 0
        %559 = vmatpush1.bf16.msra.mxu0 0
        %560 = vmatprep.subr.bf16.mxu0 0
        %561 = vmatpush1.bf16.msra.mxu0 0
        %562 = vmatprep.subr.bf16.mxu0 0
        %563 = vmatpush1.bf16.msra.mxu0 0
        %564 = vmatprep.subr.bf16.mxu0 0
        %565 = vmatpush1.bf16.msra.mxu0 0
        %566 = vmatprep.subr.bf16.mxu0 0
        %567 = vmatpush1.bf16.msra.mxu0 0
        %568 = vmatprep.subr.bf16.mxu0 0
        %569 = vmatpush1.bf16.msra.mxu0 0
        %570 = vmatprep.subr.bf16.mxu0 0
        %571 = vmatpush1.bf16.msra.mxu0 0
        %572 = vmatprep.subr.bf16.mxu0 0
        %573 = vmatpush1.bf16.msra.mxu0 0
        %574 = vmatprep.subr.bf16.mxu0 0
        %575 = vmatpush1.bf16.msra.mxu0 0
        %576 = vmatprep.mubr.bf16.mxu0 0
        %577 = vmatmul.mubr.bf16.gmra.mrb[0].mxu0 %v491
        %v578 = vpop.f32.mrb[0].mxu0
        %v579 = vadd.f32 0.0, %v578
        %v580 = vpop.f32.mrb[0].mxu0
        %v581 = vpop.f32.mrb[0].mxu0
        %v582 = vpop.f32.mrb[0].mxu0
        %583 = vdwg.mxu0
        %v584 = vlaneseq
        %v585 = vand.u32 %v584, 127
        %v586 = vadd.s32 %v585, 128
        %v587 = vadd.s32 %v585, 256
        %vm588 = vcmp.lt.s32.totalorder %v585, 0
        %v589 = vsub.s32 0, %v585
        %v590 = vsel %vm588, %v589, %v585
        %v591 = vmul.u32.u64.compose %v590, 3817748708
        %v592 = vextract.low.u32 %v591
        %v593 = vextract.high.u32 %v591
        %v594 = vshrl.u32 %v593, 4
        %v595 = vmul.u32 %v594, 18
        %v596 = vsub.s32 %v590, %v595
        %v597 = vsub.s32 0, %v596
        %v598 = vsel %vm588, %v597, %v596
        %vm599 = vcmp.lt.s32.totalorder %v586, 0
        %v600 = vsub.s32 0, %v586
        %v601 = vsel %vm599, %v600, %v586
        %v602 = vmul.u32.u64.compose %v601, 3817748708
        %v603 = vextract.low.u32 %v602
        %v604 = vextract.high.u32 %v602
        %v605 = vshrl.u32 %v604, 4
        %v606 = vmul.u32 %v605, 18
        %v607 = vsub.s32 %v601, %v606
        %v608 = vsub.s32 0, %v607
        %v609 = vsel %vm599, %v608, %v607
        %vm610 = vcmp.lt.s32.totalorder %v587, 0
        %v611 = vsub.s32 0, %v587
        %v612 = vsel %vm610, %v611, %v587
        %v613 = vmul.u32.u64.compose %v612, 3817748708
        %v614 = vextract.low.u32 %v613
        %v615 = vextract.high.u32 %v613
        %v616 = vshrl.u32 %v615, 4
        %v617 = vmul.u32 %v616, 18
        %v618 = vsub.s32 %v612, %v617
        %v619 = vsub.s32 0, %v618
        %v620 = vsel %vm610, %v619, %v618
        %vm621 = vcmp.ne.s32.totalorder %v598, 0
        %vm622 = vcmp.ne.s32.totalorder %v609, 0
        %vm623 = vcmp.ne.s32.totalorder %v620, 0
        %vm624 = vcmp.lt.s32.totalorder %v598, 0
        %vm625 = vcmp.lt.s32.totalorder %v609, 0
        %vm626 = vcmp.lt.s32.totalorder %v620, 0
        %vm627 = vmand %vm624, %vm621
        %vm628 = vmand %vm625, %vm622
        %vm629 = vmand %vm626, %vm623
        %v630 = vadd.s32 %v598, 18
        %v631 = vadd.s32 %v609, 18
        %v632 = vadd.s32 %v620, 18
        %v633 = vsel %vm627, %v630, %v598
        %v634 = vsel %vm628, %v631, %v609
        %v635 = vsel %vm629, %v632, %v620
        %vm636 = vcmp.lt.s32.totalorder %v633, 16
        %vm637 = vcmp.lt.s32.totalorder %v634, 16
        %vm638 = vcmp.lt.s32.totalorder %v635, 16
        %v639 = vsel %vm636, %v538, 0.0
        %v640 = vsel %vm637, %v540, 0.0
        %v641 = vsel %vm638, %v579, 0.0
        %v642 = vadd.f32 %v639, %v640
        %vm643 = vcmask 261120
        %v644 = vsel %vm643, %v641, 0.0
        %v645 = vadd.f32 %v642, %v644
        %646 = vadd.xlane.f32.xlu0 %v645
        %v647 = vpop.xlane.xlu0 %646
        %v648 = vmul.f32 %v639, %v639
        %v649 = vmul.f32 %v640, %v640
        %v650 = vmul.f32 %v641, %v641
        %v651 = vadd.f32 %v648, %v649
        %v652 = vsel %vm643, %v650, 0.0
        %v653 = vadd.f32 %v651, %v652
        %654 = vadd.xlane.f32.xlu0 %v653
        %v655 = vpop.xlane.xlu0 %654
        %vm656 = vcmask 7168
        %v657 = vsel %vm656, %v647, %v655
        %vm658 = vcmask 15360
        %659 = vst.msk [vmem:[%s172] sm:$0xff] %vm658, %v657
        %p660 = scmp.lt.s32.totalorder %s17, 1
        %s661 = scalar_select %p660, %s17, 1
        %s662 = smul.addr %s661, 8
        %s663 = scalar_lea.vmem %s2, %s662
        // Predicated region
        $region37: #{tpu_custom_call.1} parent=27 // pred_check
          %p664 = pneg %p82
        $region38: #{tpu_custom_call.1} parent=27 // pred_check_branch
          %666 = sbr.rel (%p664) target = $region40
        $region39: #{tpu_custom_call.1} parent=27 // pred_region
          _
        $region40: #{tpu_custom_call.1} parent=27 // pred_fallthru
          _
      $region28: #{tpu_custom_call.1} parent=5 // pred_fallthru
        _
      %p667 = scmp.le.s32.totalorder 2, %s12
      // Predicated region
      $region41: #{tpu_custom_call.1} parent=5 // pred_check
        %p668 = pneg %p667
      $region42: #{tpu_custom_call.1} parent=5 // pred_check_branch
        %670 = sbr.rel (%p668) target = $region44
      $region43: #{tpu_custom_call.1} parent=5 // pred_region
        %s671 = ssub.s32 %s12, 2
        // Predicated region
        $region45: #{tpu_custom_call.1} parent=43 // pred_check
          %p672 = pneg %p88
        $region46: #{tpu_custom_call.1} parent=43 // pred_check_branch
          %674 = sbr.rel (%p672) target = $region48
        $region47: #{tpu_custom_call.1} parent=43 // pred_region
          %p675 = scmp.lt.s32.totalorder %s18, 1
          %s676 = scalar_select %p675, %s18, 1
          %s677 = smul.addr %s676, 8
          %s678 = scalar_lea.vmem %s2, %s677
        $region48: #{tpu_custom_call.1} parent=43 // pred_fallthru
          _
      $region44: #{tpu_custom_call.1} parent=5 // pred_fallthru
        _
    $region6: #{tpu_custom_call.1} parent=1 // loop_footer
      %s16 = sadd.s32 1, %s12
    $region7: #{tpu_custom_call.1} parent=1 // loop_footer_branch
      %11 = sbr.rel target = $region3
    $region8: #{tpu_custom_call.1} parent=1 // loop_exit
      _
    %679 = vsyncpa [#allocation4], 1
    %s680 = scalar_lea.sflag [#allocation4], 1
    %681 = vsyncpa %s680, 1
    %682 = vsyncpa [#allocation6], 1
    %s683 = scalar_lea.sflag [#allocation6], 1
    %684 = vsyncpa %s683, 1

</llo_original>
